<compile_context>
chip_gen: v7x
topology: tpu7x:2x2x1
jax: 0.10.0
libtpu: 0.0.40
codegen_flags: <defaults>
</compile_context>

<pallas_src>
import math

import jax
import jax.numpy as jnp
from jax.experimental import pallas as pl
from jax.experimental.pallas import tpu as pltpu


# ----------------------------- Pallas kernel ------------------------------- #
def _mha_kernel(xq_ref, xkv_ref,
                wq_ref, bq_ref, wk_ref, bk_ref, wv_ref, bv_ref,
                wo_ref, bo_ref,
                o_ref,
                acc_ref):
    """One (query-tile, head) grid step.

    xq_ref : (TQ, Din)   bf16   query rows for this tile
    xkv_ref: (S,  Din)   bf16   full sequence (keys/values source)
    wq/wk/wv_ref: (1, Din, Dh) bf16   this head's projection slice
    bq/bk/bv_ref: (1, 1, Dh)   f32
    wo_ref : (1, Dh, O)  bf16   this head's slice of the output projection
    bo_ref : (1, O)      f32
    o_ref  : (TQ, O)     f32    output tile (written on the last head)
    acc_ref: (TQ, O)     f32    output-projection accumulator across heads
    """
    h = pl.program_id(1)
    last_h = pl.num_programs(1) - 1
    head_dim = wq_ref.shape[-1]
    scale = 1.0 / math.sqrt(head_dim)

    @pl.when(h == 0)
    def _init():
        acc_ref[...] = jnp.zeros_like(acc_ref)

    xq = xq_ref[...]     # bf16 (TQ, Din)
    xkv = xkv_ref[...]   # bf16 (S, Din)

    # Per-head projections: bf16 MXU operands, f32 accumulation.
    q = jnp.dot(xq, wq_ref[0], preferred_element_type=jnp.float32) + bq_ref[0]   # (TQ, Dh)
    k = jnp.dot(xkv, wk_ref[0], preferred_element_type=jnp.float32) + bk_ref[0]  # (S, Dh)
    v = jnp.dot(xkv, wv_ref[0], preferred_element_type=jnp.float32) + bv_ref[0]  # (S, Dh)

    q = (q * scale).astype(jnp.bfloat16)
    k = k.astype(jnp.bfloat16)
    v = v.astype(jnp.bfloat16)

    # logits = q @ k^T, contracting the head dims directly (no explicit transpose).
    logits = jax.lax.dot_general(q, k, (((1,), (1,)), ((), ())),
                                 preferred_element_type=jnp.float32)             # (TQ, S)

    # Numerically-stable softmax in f32; reciprocal goes to the EUP slot.
    m = jnp.max(logits, axis=-1, keepdims=True)
    e = jnp.exp(logits - m)
    attn = e * pl.reciprocal(jnp.sum(e, axis=-1, keepdims=True), approx=True)

    vals = jnp.dot(attn.astype(jnp.bfloat16), v,
                   preferred_element_type=jnp.float32)                           # (TQ, Dh)

    # Fused output projection: accumulate this head's contribution (no (S, E) scratch,
    # no narrow masked per-head stores).
    acc_ref[...] += jnp.dot(vals.astype(jnp.bfloat16), wo_ref[0],
                            preferred_element_type=jnp.float32)                  # (TQ, O)

    @pl.when(h == last_h)
    def _finish():
        o_ref[...] = (acc_ref[...] + bo_ref[...]).astype(o_ref.dtype)


# ------------------------------- Wrapper ------------------------------------ #
def multihead_attention(x, params, *, num_heads, q_tile=None):
    """x: (S, input_dim) f32 -> (S, embed_dim) f32. params = (wqkv, bqkv, wo, bo)."""
    wqkv, bqkv, wo, bo = params
    S, din = x.shape
    e3 = wqkv.shape[1]
    embed_dim = e3 // 3
    out_dim = wo.shape[1]
    head_dim = embed_dim // num_heads

    # --- rearrange fused qkv weight into head-major per-head q/k/v slices ----
    # Matches torch: qkv.reshape(S, H, 3*Dh).chunk(3, dim=-1)  (interleaved layout).
    wqkv_r = wqkv.reshape(din, num_heads, 3, head_dim)
    wq_r = jnp.transpose(wqkv_r[:, :, 0, :], (1, 0, 2)).astype(jnp.bfloat16)  # (H, Din, Dh)
    wk_r = jnp.transpose(wqkv_r[:, :, 1, :], (1, 0, 2)).astype(jnp.bfloat16)
    wv_r = jnp.transpose(wqkv_r[:, :, 2, :], (1, 0, 2)).astype(jnp.bfloat16)
    bqkv_r = bqkv.reshape(num_heads, 3, head_dim)
    bq_r = bqkv_r[:, 0, :].reshape(num_heads, 1, head_dim)
    bk_r = bqkv_r[:, 1, :].reshape(num_heads, 1, head_dim)
    bv_r = bqkv_r[:, 2, :].reshape(num_heads, 1, head_dim)
    wo_r = wo.reshape(num_heads, head_dim, out_dim).astype(jnp.bfloat16)       # (H, Dh, O)
    bo_r = bo.reshape(1, out_dim)

    # bf16 MXU operands for the activations too (halves HBM traffic for x).
    x_bf16 = x.astype(jnp.bfloat16)

    if q_tile is None:
        q_tile = S if S <= 512 else 512
    assert S % q_tile == 0, "sequence length must be a multiple of the query tile"
    nq = S // q_tile

    head_map = lambda i, h: (h, 0, 0)
    grid_spec = pltpu.PrefetchScalarGridSpec(
        num_scalar_prefetch=0,
        grid=(nq, num_heads),
        in_specs=[
            pl.BlockSpec((q_tile, din), lambda i, h: (i, 0)),   # query rows tile
            pl.BlockSpec((S, din), lambda i, h: (0, 0)),        # full x for K/V (resident)
            pl.BlockSpec((1, din, head_dim), head_map),         # Wq head slice
            pl.BlockSpec((1, 1, head_dim), head_map),           # bq
            pl.BlockSpec((1, din, head_dim), head_map),         # Wk head slice
            pl.BlockSpec((1, 1, head_dim), head_map),           # bk
            pl.BlockSpec((1, din, head_dim), head_map),         # Wv head slice
            pl.BlockSpec((1, 1, head_dim), head_map),           # bv
            pl.BlockSpec((1, head_dim, out_dim), head_map),     # Wo head slice
            pl.BlockSpec((1, out_dim), lambda i, h: (0, 0)),    # bo
        ],
        out_specs=pl.BlockSpec((q_tile, out_dim), lambda i, h: (i, 0)),
        scratch_shapes=[pltpu.VMEM((q_tile, out_dim), jnp.float32)],
    )

    # Advisory cost estimate for XLA scheduling around the custom call.
    per_step_flops = 2 * (q_tile * din * head_dim
                          + 2 * S * din * head_dim
                          + 2 * q_tile * S * head_dim
                          + q_tile * head_dim * out_dim)
    cost = pl.CostEstimate(
        flops=int(nq * num_heads * per_step_flops),
        transcendentals=int(nq * num_heads * q_tile * S),
        bytes_accessed=int(2 * S * din * 2                       # x (bf16), two views
                           + nq * (3 * din * embed_dim + embed_dim * out_dim) * 2
                           + S * out_dim * 4),
    )

    return pl.pallas_call(
        _mha_kernel,
        out_shape=jax.ShapeDtypeStruct((S, out_dim), jnp.float32),
        grid_spec=grid_spec,
        compiler_params=pltpu.CompilerParams(
            dimension_semantics=("parallel", "arbitrary"),
            vmem_limit_bytes=32 * 1024 * 1024,
        ),
        cost_estimate=cost,
    )(x_bf16, x_bf16, wq_r, bq_r, wk_r, bk_r, wv_r, bv_r, wo_r, bo_r)


# ----------------------- Parameter init (Xavier uniform) -------------------- #
def xavier_uniform(key, fan_in, fan_out):
    bound = math.sqrt(6.0 / (fan_in + fan_out))
    # stored as (in, out) so the computation is  x @ W  (== x @ W_torch^T)
    return jax.random.uniform(key, (fan_in, fan_out), jnp.float32, -bound, bound)


def init_params(key, input_dim, embed_dim):
    kqkv, ko = jax.random.split(key, 2)
    wqkv = xavier_uniform(kqkv, input_dim, 3 * embed_dim)
    bqkv = jnp.zeros((3 * embed_dim,), jnp.float32)
    wo = xavier_uniform(ko, embed_dim, embed_dim)
    bo = jnp.zeros((embed_dim,), jnp.float32)
    return (wqkv, bqkv, wo, bo)


# --------------------------- Pure-JAX reference ----------------------------- #
def reference(x, params, *, num_heads):
    """Mirrors the PyTorch module exactly, in f32."""
    wqkv, bqkv, wo, bo = params
    S = x.shape[0]
    embed_dim = wo.shape[0]
    head_dim = embed_dim // num_heads
    qkv = x @ wqkv + bqkv                                            # (S, 3E)
    qkv = qkv.reshape(S, num_heads, 3 * head_dim).transpose(1, 0, 2)  # (H, S, 3Dh)
    q, k, v = jnp.split(qkv, 3, axis=-1)
    logits = jnp.einsum("hqd,hkd->hqk", q, k) / math.sqrt(head_dim)
    attn = jax.nn.softmax(logits, axis=-1)
    vals = jnp.einsum("hqk,hkd->hqd", attn, v).transpose(1, 0, 2).reshape(S, embed_dim)
    return vals @ wo + bo


# ----------------------------------- Main ----------------------------------- #
if __name__ == "__main__":
    # Small shapes consistent with the module (input_dim == embed_dim as the
    # module's forward implicitly assumes).
    seq = 8
    input_dim = 32
    embed_dim = 32
    num_heads = 4

    key = jax.random.PRNGKey(0)
    kx, kp = jax.random.split(key, 2)
    x = jax.random.normal(kx, (seq, input_dim), jnp.float32)
    params = init_params(kp, input_dim, embed_dim)

    out = multihead_attention(x, params, num_heads=num_heads)
    out = jax.block_until_ready(out)

    ref = reference(x, params, num_heads=num_heads)
    assert out.shape == (seq, embed_dim)
    # Kernel uses bf16 MXU operands with f32 accumulation (per perf review),
    # so compare against the f32 reference with a bf16-appropriate tolerance.
    assert jnp.allclose(out, ref, atol=5e-2, rtol=5e-2), "mismatch vs JAX reference"

    print("KERNEL_OK")
</pallas_src>

<mosaic_0001>
module attributes {stable_mosaic.version = 11 : i64} {
  func.func @_mha_kernel(%arg0: i32, %arg1: i32, %arg2: memref<8x32xbf16, #tpu.memory_space<vmem>>, %arg3: memref<8x32xbf16, #tpu.memory_space<vmem>>, %arg4: memref<1x32x8xbf16, #tpu.memory_space<vmem>>, %arg5: memref<1x1x8xf32, #tpu.memory_space<vmem>>, %arg6: memref<1x32x8xbf16, #tpu.memory_space<vmem>>, %arg7: memref<1x1x8xf32, #tpu.memory_space<vmem>>, %arg8: memref<1x32x8xbf16, #tpu.memory_space<vmem>>, %arg9: memref<1x1x8xf32, #tpu.memory_space<vmem>>, %arg10: memref<1x8x32xbf16, #tpu.memory_space<vmem>>, %arg11: memref<1x32xf32, #tpu.memory_space<vmem>>, %arg12: memref<8x32xf32, #tpu.memory_space<vmem>>, %arg13: memref<8x32xf32, #tpu.memory_space<vmem>>) attributes {dimension_semantics = [#tpu.dimension_semantics<parallel>, #tpu.dimension_semantics<arbitrary>], iteration_bounds = array<i64: 1, 4>, scalar_prefetch = 0 : i64, scratch_operands = 1 : i64, tpu.core_type = #tpu.core_type<tc>, window_params = [{transform_indices = @transform_0, window_bounds = array<i64: 8, 32>}, {pipeline_mode = #tpu.pipeline_mode<synchronous>, transform_indices = @transform_1, window_bounds = array<i64: 8, 32>}, {transform_indices = @transform_2, window_bounds = array<i64: 1, 32, 8>}, {transform_indices = @transform_3, window_bounds = array<i64: 1, 1, 8>}, {transform_indices = @transform_4, window_bounds = array<i64: 1, 32, 8>}, {transform_indices = @transform_5, window_bounds = array<i64: 1, 1, 8>}, {transform_indices = @transform_6, window_bounds = array<i64: 1, 32, 8>}, {transform_indices = @transform_7, window_bounds = array<i64: 1, 1, 8>}, {transform_indices = @transform_8, window_bounds = array<i64: 1, 8, 32>}, {pipeline_mode = #tpu.pipeline_mode<synchronous>, transform_indices = @transform_9, window_bounds = array<i64: 1, 32>}, {transform_indices = @transform_10, window_bounds = array<i64: 8, 32>}]} {
    %c0_i32 = arith.constant 0 : i32
    %0 = arith.cmpi eq, %arg1, %c0_i32 : i32
    %1 = arith.extui %0 : i1 to i32
    %c0_i32_0 = arith.constant 0 : i32
    %2 = arith.cmpi ne, %1, %c0_i32_0 : i32
    scf.if %2 {
      %cst_38 = arith.constant 0.000000e+00 : f32
      %54 = vector.broadcast %cst_38 : f32 to vector<8x32xf32>
      %c0_39 = arith.constant 0 : index
      %c0_40 = arith.constant 0 : index
      %55 = vector.load %arg13[%c0_39, %c0_40] : memref<8x32xf32, #tpu.memory_space<vmem>>, vector<8x32xf32>
      tpu.vector_store %arg13[%c0_39, %c0_40], %54 {strides = array<i32>} : memref<8x32xf32, #tpu.memory_space<vmem>>, vector<8x32xf32>,
    } else {
    }
    %c0 = arith.constant 0 : index
    %c0_1 = arith.constant 0 : index
    %3 = vector.load %arg2[%c0, %c0_1] : memref<8x32xbf16, #tpu.memory_space<vmem>>, vector<8x32xbf16>
    %c0_2 = arith.constant 0 : index
    %c0_3 = arith.constant 0 : index
    %4 = vector.load %arg3[%c0_2, %c0_3] : memref<8x32xbf16, #tpu.memory_space<vmem>>, vector<8x32xbf16>
    %c0_4 = arith.constant 0 : index
    %c0_5 = arith.constant 0 : index
    %c0_6 = arith.constant 0 : index
    %5 = vector.load %arg4[%c0_4, %c0_5, %c0_6] : memref<1x32x8xbf16, #tpu.memory_space<vmem>>, vector<1x32x8xbf16>
    %6 = vector.shape_cast %5 : vector<1x32x8xbf16> to vector<32x8xbf16>
    %cst = arith.constant dense<0.000000e+00> : vector<8x8xf32>
    %7 = tpu.matmul %3, %6, %cst {dimension_numbers = #tpu.dot_dimension_numbers<[1], [0], [0], [1], [0, 0, 1, 1], [], []>} : vector<8x32xbf16>, vector<32x8xbf16>, vector<8x8xf32> -> vector<8x8xf32>
    %c0_7 = arith.constant 0 : index
    %c0_8 = arith.constant 0 : index
    %c0_9 = arith.constant 0 : index
    %8 = vector.load %arg5[%c0_7, %c0_8, %c0_9] : memref<1x1x8xf32, #tpu.memory_space<vmem>>, vector<1x1x8xf32>
    %9 = vector.shape_cast %8 : vector<1x1x8xf32> to vector<1x8xf32>
    %10 = vector.broadcast %9 : vector<1x8xf32> to vector<8x8xf32>
    %11 = arith.addf %7, %10 : vector<8x8xf32>
    %c0_10 = arith.constant 0 : index
    %c0_11 = arith.constant 0 : index
    %c0_12 = arith.constant 0 : index
    %12 = vector.load %arg6[%c0_10, %c0_11, %c0_12] : memref<1x32x8xbf16, #tpu.memory_space<vmem>>, vector<1x32x8xbf16>
    %13 = vector.shape_cast %12 : vector<1x32x8xbf16> to vector<32x8xbf16>
    %cst_13 = arith.constant dense<0.000000e+00> : vector<8x8xf32>
    %14 = tpu.matmul %4, %13, %cst_13 {dimension_numbers = #tpu.dot_dimension_numbers<[1], [0], [0], [1], [0, 0, 1, 1], [], []>} : vector<8x32xbf16>, vector<32x8xbf16>, vector<8x8xf32> -> vector<8x8xf32>
    %c0_14 = arith.constant 0 : index
    %c0_15 = arith.constant 0 : index
    %c0_16 = arith.constant 0 : index
    %15 = vector.load %arg7[%c0_14, %c0_15, %c0_16] : memref<1x1x8xf32, #tpu.memory_space<vmem>>, vector<1x1x8xf32>
    %16 = vector.shape_cast %15 : vector<1x1x8xf32> to vector<1x8xf32>
    %17 = vector.broadcast %16 : vector<1x8xf32> to vector<8x8xf32>
    %18 = arith.addf %14, %17 : vector<8x8xf32>
    %c0_17 = arith.constant 0 : index
    %c0_18 = arith.constant 0 : index
    %c0_19 = arith.constant 0 : index
    %19 = vector.load %arg8[%c0_17, %c0_18, %c0_19] : memref<1x32x8xbf16, #tpu.memory_space<vmem>>, vector<1x32x8xbf16>
    %20 = vector.shape_cast %19 : vector<1x32x8xbf16> to vector<32x8xbf16>
    %cst_20 = arith.constant dense<0.000000e+00> : vector<8x8xf32>
    %21 = tpu.matmul %4, %20, %cst_20 {dimension_numbers = #tpu.dot_dimension_numbers<[1], [0], [0], [1], [0, 0, 1, 1], [], []>} : vector<8x32xbf16>, vector<32x8xbf16>, vector<8x8xf32> -> vector<8x8xf32>
    %c0_21 = arith.constant 0 : index
    %c0_22 = arith.constant 0 : index
    %c0_23 = arith.constant 0 : index
    %22 = vector.load %arg9[%c0_21, %c0_22, %c0_23] : memref<1x1x8xf32, #tpu.memory_space<vmem>>, vector<1x1x8xf32>
    %23 = vector.shape_cast %22 : vector<1x1x8xf32> to vector<1x8xf32>
    %24 = vector.broadcast %23 : vector<1x8xf32> to vector<8x8xf32>
    %25 = arith.addf %21, %24 : vector<8x8xf32>
    %cst_24 = arith.constant 0.353553385 : f32
    %26 = vector.broadcast %cst_24 : f32 to vector<8x8xf32>
    %27 = arith.mulf %11, %26 : vector<8x8xf32>
    %28 = arith.truncf %27 : vector<8x8xf32> to vector<8x8xbf16>
    %29 = arith.truncf %18 : vector<8x8xf32> to vector<8x8xbf16>
    %30 = arith.truncf %25 : vector<8x8xf32> to vector<8x8xbf16>
    %cst_25 = arith.constant dense<0.000000e+00> : vector<8x8xf32>
    %31 = tpu.matmul %28, %29, %cst_25 {dimension_numbers = #tpu.dot_dimension_numbers<[1], [1], [0], [0], [0, 0, 1, 0], [], []>} : vector<8x8xbf16>, vector<8x8xbf16>, vector<8x8xf32> -> vector<8x8xf32>
    %cst_26 = arith.constant dense<0xFF800000> : vector<8xf32>
    %32 = vector.multi_reduction <maximumf>, %31, %cst_26 [1] : vector<8x8xf32> to vector<8xf32>
    %33 = vector.shape_cast %32 : vector<8xf32> to vector<8x1xf32>
    %34 = vector.broadcast %33 : vector<8x1xf32> to vector<8x8xf32>
    %35 = arith.subf %31, %34 : vector<8x8xf32>
    %36 = math.exp %35 : vector<8x8xf32>
    %cst_27 = arith.constant dense<0.000000e+00> : vector<8xf32>
    %37 = vector.multi_reduction <add>, %36, %cst_27 [1] : vector<8x8xf32> to vector<8xf32>
    %38 = vector.shape_cast %37 : vector<8xf32> to vector<8x1xf32>
    %39 = tpu.reciprocal %38 {approx = true} : vector<8x1xf32> -> vector<8x1xf32>
    %40 = vector.broadcast %39 : vector<8x1xf32> to vector<8x8xf32>
    %41 = arith.mulf %36, %40 : vector<8x8xf32>
    %42 = arith.truncf %41 : vector<8x8xf32> to vector<8x8xbf16>
    %cst_28 = arith.constant dense<0.000000e+00> : vector<8x8xf32>
    %43 = tpu.matmul %42, %30, %cst_28 {dimension_numbers = #tpu.dot_dimension_numbers<[1], [0], [0], [1], [0, 0, 1, 1], [], []>} : vector<8x8xbf16>, vector<8x8xbf16>, vector<8x8xf32> -> vector<8x8xf32>
    %c0_29 = arith.constant 0 : index
    %c0_30 = arith.constant 0 : index
    %44 = vector.load %arg13[%c0_29, %c0_30] : memref<8x32xf32, #tpu.memory_space<vmem>>, vector<8x32xf32>
    %45 = arith.truncf %43 : vector<8x8xf32> to vector<8x8xbf16>
    %c0_31 = arith.constant 0 : index
    %c0_32 = arith.constant 0 : index
    %c0_33 = arith.constant 0 : index
    %46 = vector.load %arg10[%c0_31, %c0_32, %c0_33] : memref<1x8x32xbf16, #tpu.memory_space<vmem>>, vector<1x8x32xbf16>
    %47 = vector.shape_cast %46 : vector<1x8x32xbf16> to vector<8x32xbf16>
    %cst_34 = arith.constant dense<0.000000e+00> : vector<8x32xf32>
    %48 = tpu.matmul %45, %47, %cst_34 {dimension_numbers = #tpu.dot_dimension_numbers<[1], [0], [0], [1], [0, 0, 1, 1], [], []>} : vector<8x8xbf16>, vector<8x32xbf16>, vector<8x32xf32> -> vector<8x32xf32>
    %49 = arith.addf %44, %48 : vector<8x32xf32>
    %c0_35 = arith.constant 0 : index
    %c0_36 = arith.constant 0 : index
    %50 = vector.load %arg13[%c0_35, %c0_36] : memref<8x32xf32, #tpu.memory_space<vmem>>, vector<8x32xf32>
    tpu.vector_store %arg13[%c0_35, %c0_36], %49 {strides = array<i32>} : memref<8x32xf32, #tpu.memory_space<vmem>>, vector<8x32xf32>,
    %c3_i32 = arith.constant 3 : i32
    %51 = arith.cmpi eq, %arg1, %c3_i32 : i32
    %52 = arith.extui %51 : i1 to i32
    %c0_i32_37 = arith.constant 0 : i32
    %53 = arith.cmpi ne, %52, %c0_i32_37 : i32
    scf.if %53 {
      %c0_38 = arith.constant 0 : index
      %c0_39 = arith.constant 0 : index
      %54 = vector.load %arg13[%c0_38, %c0_39] : memref<8x32xf32, #tpu.memory_space<vmem>>, vector<8x32xf32>
      %c0_40 = arith.constant 0 : index
      %c0_41 = arith.constant 0 : index
      %55 = vector.load %arg11[%c0_40, %c0_41] : memref<1x32xf32, #tpu.memory_space<vmem>>, vector<1x32xf32>
      %56 = vector.broadcast %55 : vector<1x32xf32> to vector<8x32xf32>
      %57 = arith.addf %54, %56 : vector<8x32xf32>
      %c0_42 = arith.constant 0 : index
      %c0_43 = arith.constant 0 : index
      %58 = vector.load %arg12[%c0_42, %c0_43] : memref<8x32xf32, #tpu.memory_space<vmem>>, vector<8x32xf32>
      tpu.vector_store %arg12[%c0_42, %c0_43], %57 {strides = array<i32>} : memref<8x32xf32, #tpu.memory_space<vmem>>, vector<8x32xf32>,
    } else {
    }
    return
  }
  func.func @transform_0(%arg0: i32, %arg1: i32) -> (i32, i32) {
    %c0_i32 = arith.constant 0 : i32
    %c0_i32_0 = arith.constant 0 : i32
    return %arg0, %c0_i32 : i32, i32
  }
  func.func @transform_1(%arg0: i32, %arg1: i32) -> (i32, i32) {
    %c0_i32 = arith.constant 0 : i32
    %c0_i32_0 = arith.constant 0 : i32
    %c0_i32_1 = arith.constant 0 : i32
    return %c0_i32, %c0_i32_0 : i32, i32
  }
  func.func @transform_2(%arg0: i32, %arg1: i32) -> (i32, i32, i32) {
    %c0_i32 = arith.constant 0 : i32
    %c0_i32_0 = arith.constant 0 : i32
    %c0_i32_1 = arith.constant 0 : i32
    return %arg1, %c0_i32, %c0_i32_0 : i32, i32, i32
  }
  func.func @transform_3(%arg0: i32, %arg1: i32) -> (i32, i32, i32) {
    %c0_i32 = arith.constant 0 : i32
    %c0_i32_0 = arith.constant 0 : i32
    %c0_i32_1 = arith.constant 0 : i32
    return %arg1, %c0_i32, %c0_i32_0 : i32, i32, i32
  }
  func.func @transform_4(%arg0: i32, %arg1: i32) -> (i32, i32, i32) {
    %c0_i32 = arith.constant 0 : i32
    %c0_i32_0 = arith.constant 0 : i32
    %c0_i32_1 = arith.constant 0 : i32
    return %arg1, %c0_i32, %c0_i32_0 : i32, i32, i32
  }
  func.func @transform_5(%arg0: i32, %arg1: i32) -> (i32, i32, i32) {
    %c0_i32 = arith.constant 0 : i32
    %c0_i32_0 = arith.constant 0 : i32
    %c0_i32_1 = arith.constant 0 : i32
    return %arg1, %c0_i32, %c0_i32_0 : i32, i32, i32
  }
  func.func @transform_6(%arg0: i32, %arg1: i32) -> (i32, i32, i32) {
    %c0_i32 = arith.constant 0 : i32
    %c0_i32_0 = arith.constant 0 : i32
    %c0_i32_1 = arith.constant 0 : i32
    return %arg1, %c0_i32, %c0_i32_0 : i32, i32, i32
  }
  func.func @transform_7(%arg0: i32, %arg1: i32) -> (i32, i32, i32) {
    %c0_i32 = arith.constant 0 : i32
    %c0_i32_0 = arith.constant 0 : i32
    %c0_i32_1 = arith.constant 0 : i32
    return %arg1, %c0_i32, %c0_i32_0 : i32, i32, i32
  }
  func.func @transform_8(%arg0: i32, %arg1: i32) -> (i32, i32, i32) {
    %c0_i32 = arith.constant 0 : i32
    %c0_i32_0 = arith.constant 0 : i32
    %c0_i32_1 = arith.constant 0 : i32
    return %arg1, %c0_i32, %c0_i32_0 : i32, i32, i32
  }
  func.func @transform_9(%arg0: i32, %arg1: i32) -> (i32, i32) {
    %c0_i32 = arith.constant 0 : i32
    %c0_i32_0 = arith.constant 0 : i32
    %c0_i32_1 = arith.constant 0 : i32
    return %c0_i32, %c0_i32_0 : i32, i32
  }
  func.func @transform_10(%arg0: i32, %arg1: i32) -> (i32, i32) {
    %c0_i32 = arith.constant 0 : i32
    %c0_i32_0 = arith.constant 0 : i32
    return %arg0, %c0_i32 : i32, i32
  }
}

</mosaic_0001>

<llo_original>
// kernel: tpu_custom_call.1
$region0: #{tpu_custom_call.1}
  #allocation0 [shape = 'u32[]', space=smem, size = 0x4, offset = 0x4, fixed_abs, tag = 'smem constant byte address 0x4 - core index']
  #allocation1 [shape = 'u32[144,128]{1,0:T(1,128)}', space=vmem, size = 0x12000, scoped, tag = 'internal scratch']
  #allocation2 [shape = 'f32[8,32]{1,0:T(8,128)}', space=vmem, size = 0x1000, scoped, tag = 'scratch operand']
  %s0 = inlined_call_operand.vmem [shape: bf16[8,32], index: 0, kind: input, shape index: {}]
  %s1 = inlined_call_operand.vmem [shape: bf16[8,32], index: 1, kind: input, shape index: {}]
  %s2 = inlined_call_operand.vmem [shape: bf16[4,32,8], index: 2, kind: input, shape index: {}]
  %s3 = inlined_call_operand.vmem [shape: f32[4,1,8], index: 3, kind: input, shape index: {}]
  %s4 = inlined_call_operand.vmem [shape: bf16[4,32,8], index: 4, kind: input, shape index: {}]
  %s5 = inlined_call_operand.vmem [shape: f32[4,1,8], index: 5, kind: input, shape index: {}]
  %s6 = inlined_call_operand.vmem [shape: bf16[4,32,8], index: 6, kind: input, shape index: {}]
  %s7 = inlined_call_operand.vmem [shape: f32[4,1,8], index: 7, kind: input, shape index: {}]
  %s8 = inlined_call_operand.vmem [shape: bf16[4,8,32], index: 8, kind: input, shape index: {}]
  %s9 = inlined_call_operand.vmem [shape: f32[1,32], index: 9, kind: input, shape index: {}]
  %s10 = inlined_call_operand.hbm [shape: f32[8,32], index: 10, kind: output, shape index: {}]
  %s11 = sld [smem:[#allocation0]]
  $region81: #{tpu_custom_call.1} parent=0
    _
  %s13 = ssub.s32 1, %s11
  %s14 = scalar_select 0, %s13, %s11
  $region1: #{tpu_custom_call.1} parent=0
    #allocation3 [shape = 'u8[4096]{0}', space=vmem, size = 0x1000, scoped, tag = 'output window, operand 0, single buffered']
    #allocation4 [shape = 's32[2]{0}', space=sflag, size = 0x8, scoped, tag = 'scoped memory for tpu_custom_call.1']
    %15 = vsyncpa [#allocation4], 0
    loop: start=0, step=1, limit=6
    $region2: #{tpu_custom_call.1} parent=1 // loop_pre_header
      _
    $region3: #{tpu_custom_call.1} parent=1 // loop_header
      %s17 = sphi 0, %s21
      %p18 = scmp.ge.s32.totalorder %s17, 6
      %s24 = sphi 0, %s36
      %s25 = sphi 0, %s32
      %s26 = sphi 0, %s24
      %s27 = sphi 0, %s25
      %s28 = sphi 0, %s26
      %s29 = sphi 0, %s27
      %s39 = sphi 0, %s41
      %s42 = sphi 0, %s39
      %s43 = sphi 0, %s42
      %s59 = sphi 0, %s43
      %s63 = sphi 0, %s63
      %s65 = sphi 0, %s63
      %s66 = sphi 0, %s65
      %s80 = sphi 0, %s66
      %s86 = sphi 0, %s88
      %s89 = sphi 0, %s86
      %s90 = sphi 0, %s89
      %s106 = sphi 0, %s90
      %s112 = sphi 0, %s114
      %s115 = sphi 0, %s112
      %s116 = sphi 0, %s115
      %s132 = sphi 0, %s116
      %s138 = sphi 0, %s140
      %s141 = sphi 0, %s138
      %s142 = sphi 0, %s141
      %s158 = sphi 0, %s142
      %s164 = sphi 0, %s166
      %s167 = sphi 0, %s164
      %s168 = sphi 0, %s167
      %s184 = sphi 0, %s168
      %s190 = sphi 0, %s192
      %s193 = sphi 0, %s190
      %s194 = sphi 0, %s193
      %s210 = sphi 0, %s194
      %s216 = sphi 0, %s218
      %s219 = sphi 0, %s216
      %s220 = sphi 0, %s219
      %s236 = sphi 0, %s220
      %s242 = sphi 0, %s244
      %s245 = sphi 0, %s242
      %s246 = sphi 0, %s245
      %s262 = sphi 0, %s246
      %s266 = sphi 0, %s266
      %s268 = sphi 0, %s266
      %s269 = sphi 0, %s268
      %s283 = sphi 0, %s269
      %s289 = sphi 0, %s291
      %s292 = sphi 0, %s289
      %s293 = sphi 0, %s292
      %s309 = sphi 0, %s293
    $region4: #{tpu_custom_call.1} parent=1 // loop_header_branch
      %20 = sbr.rel (%p18) target = $region8
    $region5: #{tpu_custom_call.1} parent=1 // loop_body
      %s22 = ssub.s32 %s17, 1
      %s23 = ssub.s32 %s17, 2
      %s30 = sadd.s32 1, %s25
      %p31 = scmp.ge.s32.totalorder %s30, 4
      %s32 = scalar_select %p31, 0, %s30
      %s33 = sadd.s32 1, %s24
      %s34 = scalar_select %p31, %s33, %s24
      %p35 = scmp.ge.s32.totalorder %s34, 1
      %s36 = scalar_select %p35, 0, %s34
      %s37 = ssub.s32 %s24, %s36
      %p38 = scmp.eq.s32.totalorder %s37, 0
      %s40 = sadd.s32 %s39, 1
      %s41 = scalar_select %p38, %s39, %s40
      %p44 = pneg %p38
      %p45 = scmp.eq.s32.totalorder %s17, 3
      %p46 = por %p44, %p45
      %p47 = scmp.ne.s32.totalorder %s39, %s42
      %p48 = scmp.eq.s32.totalorder %s17, 0
      %p49 = por %p47, %p48
      %p50 = scmp.ne.s32.totalorder %s39, %s42
      %p51 = scmp.eq.s32.totalorder %s22, 3
      %p52 = por %p50, %p51
      %p53 = scmp.ne.s32.totalorder %s42, %s43
      %p54 = scmp.eq.s32.totalorder %s22, 0
      %p55 = por %p53, %p54
      %p56 = scmp.ne.s32.totalorder %s42, %s43
      %p57 = scmp.eq.s32.totalorder %s23, 3
      %p58 = por %p56, %p57
      %p60 = scmp.ne.s32.totalorder %s43, %s59
      %p61 = scmp.eq.s32.totalorder %s23, 0
      %p62 = por %p60, %p61
      %s64 = sadd.s32 %s63, 1
      %p67 = scmp.eq.s32.totalorder %s17, 3
      %p68 = scmp.ne.s32.totalorder %s63, %s65
      %p69 = scmp.eq.s32.totalorder %s17, 0
      %p70 = por %p68, %p69
      %p71 = scmp.ne.s32.totalorder %s63, %s65
      %p72 = scmp.eq.s32.totalorder %s22, 3
      %p73 = por %p71, %p72
      %p74 = scmp.ne.s32.totalorder %s65, %s66
      %p75 = scmp.eq.s32.totalorder %s22, 0
      %p76 = por %p74, %p75
      %p77 = scmp.ne.s32.totalorder %s65, %s66
      %p78 = scmp.eq.s32.totalorder %s23, 3
      %p79 = por %p77, %p78
      %p81 = scmp.ne.s32.totalorder %s66, %s80
      %p82 = scmp.eq.s32.totalorder %s23, 0
      %p83 = por %p81, %p82
      %s84 = ssub.s32 %s25, %s32
      %p85 = scmp.eq.s32.totalorder %s84, 0
      %s87 = sadd.s32 %s86, 1
      %s88 = scalar_select %p85, %s86, %s87
      %p91 = pneg %p85
      %p92 = scmp.eq.s32.totalorder %s17, 3
      %p93 = por %p91, %p92
      %p94 = scmp.ne.s32.totalorder %s86, %s89
      %p95 = scmp.eq.s32.totalorder %s17, 0
      %p96 = por %p94, %p95
      %p97 = scmp.ne.s32.totalorder %s86, %s89
      %p98 = scmp.eq.s32.totalorder %s22, 3
      %p99 = por %p97, %p98
      %p100 = scmp.ne.s32.totalorder %s89, %s90
      %p101 = scmp.eq.s32.totalorder %s22, 0
      %p102 = por %p100, %p101
      %p103 = scmp.ne.s32.totalorder %s89, %s90
      %p104 = scmp.eq.s32.totalorder %s23, 3
      %p105 = por %p103, %p104
      %p107 = scmp.ne.s32.totalorder %s90, %s106
      %p108 = scmp.eq.s32.totalorder %s23, 0
      %p109 = por %p107, %p108
      %s110 = ssub.s32 %s25, %s32
      %p111 = scmp.eq.s32.totalorder %s110, 0
      %s113 = sadd.s32 %s112, 1
      %s114 = scalar_select %p111, %s112, %s113
      %p117 = pneg %p111
      %p118 = scmp.eq.s32.totalorder %s17, 3
      %p119 = por %p117, %p118
      %p120 = scmp.ne.s32.totalorder %s112, %s115
      %p121 = scmp.eq.s32.totalorder %s17, 0
      %p122 = por %p120, %p121
      %p123 = scmp.ne.s32.totalorder %s112, %s115
      %p124 = scmp.eq.s32.totalorder %s22, 3
      %p125 = por %p123, %p124
      %p126 = scmp.ne.s32.totalorder %s115, %s116
      %p127 = scmp.eq.s32.totalorder %s22, 0
      %p128 = por %p126, %p127
      %p129 = scmp.ne.s32.totalorder %s115, %s116
      %p130 = scmp.eq.s32.totalorder %s23, 3
      %p131 = por %p129, %p130
      %p133 = scmp.ne.s32.totalorder %s116, %s132
      %p134 = scmp.eq.s32.totalorder %s23, 0
      %p135 = por %p133, %p134
      %s136 = ssub.s32 %s25, %s32
      %p137 = scmp.eq.s32.totalorder %s136, 0
      %s139 = sadd.s32 %s138, 1
      %s140 = scalar_select %p137, %s138, %s139
      %p143 = pneg %p137
      %p144 = scmp.eq.s32.totalorder %s17, 3
      %p145 = por %p143, %p144
      %p146 = scmp.ne.s32.totalorder %s138, %s141
      %p147 = scmp.eq.s32.totalorder %s17, 0
      %p148 = por %p146, %p147
      %p149 = scmp.ne.s32.totalorder %s138, %s141
      %p150 = scmp.eq.s32.totalorder %s22, 3
      %p151 = por %p149, %p150
      %p152 = scmp.ne.s32.totalorder %s141, %s142
      %p153 = scmp.eq.s32.totalorder %s22, 0
      %p154 = por %p152, %p153
      %p155 = scmp.ne.s32.totalorder %s141, %s142
      %p156 = scmp.eq.s32.totalorder %s23, 3
      %p157 = por %p155, %p156
      %p159 = scmp.ne.s32.totalorder %s142, %s158
      %p160 = scmp.eq.s32.totalorder %s23, 0
      %p161 = por %p159, %p160
      %s162 = ssub.s32 %s25, %s32
      %p163 = scmp.eq.s32.totalorder %s162, 0
      %s165 = sadd.s32 %s164, 1
      %s166 = scalar_select %p163, %s164, %s165
      %p169 = pneg %p163
      %p170 = scmp.eq.s32.totalorder %s17, 3
      %p171 = por %p169, %p170
      %p172 = scmp.ne.s32.totalorder %s164, %s167
      %p173 = scmp.eq.s32.totalorder %s17, 0
      %p174 = por %p172, %p173
      %p175 = scmp.ne.s32.totalorder %s164, %s167
      %p176 = scmp.eq.s32.totalorder %s22, 3
      %p177 = por %p175, %p176
      %p178 = scmp.ne.s32.totalorder %s167, %s168
      %p179 = scmp.eq.s32.totalorder %s22, 0
      %p180 = por %p178, %p179
      %p181 = scmp.ne.s32.totalorder %s167, %s168
      %p182 = scmp.eq.s32.totalorder %s23, 3
      %p183 = por %p181, %p182
      %p185 = scmp.ne.s32.totalorder %s168, %s184
      %p186 = scmp.eq.s32.totalorder %s23, 0
      %p187 = por %p185, %p186
      %s188 = ssub.s32 %s25, %s32
      %p189 = scmp.eq.s32.totalorder %s188, 0
      %s191 = sadd.s32 %s190, 1
      %s192 = scalar_select %p189, %s190, %s191
      %p195 = pneg %p189
      %p196 = scmp.eq.s32.totalorder %s17, 3
      %p197 = por %p195, %p196
      %p198 = scmp.ne.s32.totalorder %s190, %s193
      %p199 = scmp.eq.s32.totalorder %s17, 0
      %p200 = por %p198, %p199
      %p201 = scmp.ne.s32.totalorder %s190, %s193
      %p202 = scmp.eq.s32.totalorder %s22, 3
      %p203 = por %p201, %p202
      %p204 = scmp.ne.s32.totalorder %s193, %s194
      %p205 = scmp.eq.s32.totalorder %s22, 0
      %p206 = por %p204, %p205
      %p207 = scmp.ne.s32.totalorder %s193, %s194
      %p208 = scmp.eq.s32.totalorder %s23, 3
      %p209 = por %p207, %p208
      %p211 = scmp.ne.s32.totalorder %s194, %s210
      %p212 = scmp.eq.s32.totalorder %s23, 0
      %p213 = por %p211, %p212
      %s214 = ssub.s32 %s25, %s32
      %p215 = scmp.eq.s32.totalorder %s214, 0
      %s217 = sadd.s32 %s216, 1
      %s218 = scalar_select %p215, %s216, %s217
      %p221 = pneg %p215
      %p222 = scmp.eq.s32.totalorder %s17, 3
      %p223 = por %p221, %p222
      %p224 = scmp.ne.s32.totalorder %s216, %s219
      %p225 = scmp.eq.s32.totalorder %s17, 0
      %p226 = por %p224, %p225
      %p227 = scmp.ne.s32.totalorder %s216, %s219
      %p228 = scmp.eq.s32.totalorder %s22, 3
      %p229 = por %p227, %p228
      %p230 = scmp.ne.s32.totalorder %s219, %s220
      %p231 = scmp.eq.s32.totalorder %s22, 0
      %p232 = por %p230, %p231
      %p233 = scmp.ne.s32.totalorder %s219, %s220
      %p234 = scmp.eq.s32.totalorder %s23, 3
      %p235 = por %p233, %p234
      %p237 = scmp.ne.s32.totalorder %s220, %s236
      %p238 = scmp.eq.s32.totalorder %s23, 0
      %p239 = por %p237, %p238
      %s240 = ssub.s32 %s25, %s32
      %p241 = scmp.eq.s32.totalorder %s240, 0
      %s243 = sadd.s32 %s242, 1
      %s244 = scalar_select %p241, %s242, %s243
      %p247 = pneg %p241
      %p248 = scmp.eq.s32.totalorder %s17, 3
      %p249 = por %p247, %p248
      %p250 = scmp.ne.s32.totalorder %s242, %s245
      %p251 = scmp.eq.s32.totalorder %s17, 0
      %p252 = por %p250, %p251
      %p253 = scmp.ne.s32.totalorder %s242, %s245
      %p254 = scmp.eq.s32.totalorder %s22, 3
      %p255 = por %p253, %p254
      %p256 = scmp.ne.s32.totalorder %s245, %s246
      %p257 = scmp.eq.s32.totalorder %s22, 0
      %p258 = por %p256, %p257
      %p259 = scmp.ne.s32.totalorder %s245, %s246
      %p260 = scmp.eq.s32.totalorder %s23, 3
      %p261 = por %p259, %p260
      %p263 = scmp.ne.s32.totalorder %s246, %s262
      %p264 = scmp.eq.s32.totalorder %s23, 0
      %p265 = por %p263, %p264
      %s267 = sadd.s32 %s266, 1
      %p270 = scmp.eq.s32.totalorder %s17, 3
      %p271 = scmp.ne.s32.totalorder %s266, %s268
      %p272 = scmp.eq.s32.totalorder %s17, 0
      %p273 = por %p271, %p272
      %p274 = scmp.ne.s32.totalorder %s266, %s268
      %p275 = scmp.eq.s32.totalorder %s22, 3
      %p276 = por %p274, %p275
      %p277 = scmp.ne.s32.totalorder %s268, %s269
      %p278 = scmp.eq.s32.totalorder %s22, 0
      %p279 = por %p277, %p278
      %p280 = scmp.ne.s32.totalorder %s268, %s269
      %p281 = scmp.eq.s32.totalorder %s23, 3
      %p282 = por %p280, %p281
      %p284 = scmp.ne.s32.totalorder %s269, %s283
      %p285 = scmp.eq.s32.totalorder %s23, 0
      %p286 = por %p284, %p285
      %s287 = ssub.s32 %s24, %s36
      %p288 = scmp.eq.s32.totalorder %s287, 0
      %s290 = sadd.s32 %s289, 1
      %s291 = scalar_select %p288, %s289, %s290
      %p294 = pneg %p288
      %p295 = scmp.eq.s32.totalorder %s17, 3
      %p296 = por %p294, %p295
      %p297 = scmp.ne.s32.totalorder %s289, %s292
      %p298 = scmp.eq.s32.totalorder %s17, 0
      %p299 = por %p297, %p298
      %p300 = scmp.ne.s32.totalorder %s289, %s292
      %p301 = scmp.eq.s32.totalorder %s22, 3
      %p302 = por %p300, %p301
      %p303 = scmp.ne.s32.totalorder %s292, %s293
      %p304 = scmp.eq.s32.totalorder %s22, 0
      %p305 = por %p303, %p304
      %p306 = scmp.ne.s32.totalorder %s292, %s293
      %p307 = scmp.eq.s32.totalorder %s23, 3
      %p308 = por %p306, %p307
      %p310 = scmp.ne.s32.totalorder %s293, %s309
      %p311 = scmp.eq.s32.totalorder %s23, 0
      %p312 = por %p310, %p311
      %p313 = scmp.le.s32.totalorder 1, %s17
      %p314 = scmp.lt.s32.totalorder %s17, 5
      %p315 = pnand %p313, %p314
      %p316 = pneg %p315
      // Predicated region
      $region9: #{tpu_custom_call.1} parent=5 // pred_check
        _
      $region10: #{tpu_custom_call.1} parent=5 // pred_check_branch
        %318 = sbr.rel (%p315) target = $region12
      $region11: #{tpu_custom_call.1} parent=5 // pred_region
        %s319 = ssub.s32 %s17, 1
        // Predicated region
        $region13: #{tpu_custom_call.1} parent=11 // pred_check
          %p320 = pneg %p55
        $region14: #{tpu_custom_call.1} parent=11 // pred_check_branch
          %322 = sbr.rel (%p320) target = $region16
        $region15: #{tpu_custom_call.1} parent=11 // pred_region
          %p323 = scmp.lt.s32.totalorder %s26, 0
          %s324 = scalar_select %p323, %s26, 0
          %s325 = smul.addr %s324, 4
          %s326 = scalar_lea.vmem %s0, %s325
        $region16: #{tpu_custom_call.1} parent=11 // pred_fallthru
          _
        // Predicated region
        $region17: #{tpu_custom_call.1} parent=11 // pred_check
          %p327 = pneg %p76
        $region18: #{tpu_custom_call.1} parent=11 // pred_check_branch
          %329 = sbr.rel (%p327) target = $region20
        $region19: #{tpu_custom_call.1} parent=11 // pred_region
          _
        $region20: #{tpu_custom_call.1} parent=11 // pred_fallthru
          _
        // Predicated region
        $region21: #{tpu_custom_call.1} parent=11 // pred_check
          %p330 = pneg %p279
        $region22: #{tpu_custom_call.1} parent=11 // pred_check_branch
          %332 = sbr.rel (%p330) target = $region24
        $region23: #{tpu_custom_call.1} parent=11 // pred_region
          _
        $region24: #{tpu_custom_call.1} parent=11 // pred_fallthru
          _
      $region12: #{tpu_custom_call.1} parent=5 // pred_fallthru
        _
      %p333 = scmp.lt.s32.totalorder %s17, 4
      // Predicated region
      $region25: #{tpu_custom_call.1} parent=5 // pred_check
        %p334 = pneg %p333
      $region26: #{tpu_custom_call.1} parent=5 // pred_check_branch
        %336 = sbr.rel (%p334) target = $region28
      $region27: #{tpu_custom_call.1} parent=5 // pred_region
        // Predicated region
        $region29: #{tpu_custom_call.1} parent=27 // pred_check
          %p337 = pneg %p96
        $region30: #{tpu_custom_call.1} parent=27 // pred_check_branch
          %339 = sbr.rel (%p337) target = $region32
        $region31: #{tpu_custom_call.1} parent=27 // pred_region
          %p340 = scmp.lt.s32.totalorder %s25, 3
          %s341 = scalar_select %p340, %s25, 3
          %s342 = smul.addr %s341, 4
          %s343 = smul.addr %s342, 4
          %s344 = scalar_lea.vmem %s2, %s343
        $region32: #{tpu_custom_call.1} parent=27 // pred_fallthru
          _
        // Predicated region
        $region33: #{tpu_custom_call.1} parent=27 // pred_check
          %p345 = pneg %p122
        $region34: #{tpu_custom_call.1} parent=27 // pred_check_branch
          %347 = sbr.rel (%p345) target = $region36
        $region35: #{tpu_custom_call.1} parent=27 // pred_region
          %p348 = scmp.lt.s32.totalorder %s25, 3
          %s349 = scalar_select %p348, %s25, 3
          %s350 = scalar_lea.vmem %s3, %s349
        $region36: #{tpu_custom_call.1} parent=27 // pred_fallthru
          _
        // Predicated region
        $region37: #{tpu_custom_call.1} parent=27 // pred_check
          %p351 = pneg %p148
        $region38: #{tpu_custom_call.1} parent=27 // pred_check_branch
          %353 = sbr.rel (%p351) target = $region40
        $region39: #{tpu_custom_call.1} parent=27 // pred_region
          %p354 = scmp.lt.s32.totalorder %s25, 3
          %s355 = scalar_select %p354, %s25, 3
          %s356 = smul.addr %s355, 4
          %s357 = smul.addr %s356, 4
          %s358 = scalar_lea.vmem %s4, %s357
        $region40: #{tpu_custom_call.1} parent=27 // pred_fallthru
          _
        // Predicated region
        $region41: #{tpu_custom_call.1} parent=27 // pred_check
          %p359 = pneg %p174
        $region42: #{tpu_custom_call.1} parent=27 // pred_check_branch
          %361 = sbr.rel (%p359) target = $region44
        $region43: #{tpu_custom_call.1} parent=27 // pred_region
          %p362 = scmp.lt.s32.totalorder %s25, 3
          %s363 = scalar_select %p362, %s25, 3
          %s364 = scalar_lea.vmem %s5, %s363
        $region44: #{tpu_custom_call.1} parent=27 // pred_fallthru
          _
        // Predicated region
        $region45: #{tpu_custom_call.1} parent=27 // pred_check
          %p365 = pneg %p200
        $region46: #{tpu_custom_call.1} parent=27 // pred_check_branch
          %367 = sbr.rel (%p365) target = $region48
        $region47: #{tpu_custom_call.1} parent=27 // pred_region
          %p368 = scmp.lt.s32.totalorder %s25, 3
          %s369 = scalar_select %p368, %s25, 3
          %s370 = smul.addr %s369, 4
          %s371 = smul.addr %s370, 4
          %s372 = scalar_lea.vmem %s6, %s371
        $region48: #{tpu_custom_call.1} parent=27 // pred_fallthru
          _
        // Predicated region
        $region49: #{tpu_custom_call.1} parent=27 // pred_check
          %p373 = pneg %p226
        $region50: #{tpu_custom_call.1} parent=27 // pred_check_branch
          %375 = sbr.rel (%p373) target = $region52
        $region51: #{tpu_custom_call.1} parent=27 // pred_region
          %p376 = scmp.lt.s32.totalorder %s25, 3
          %s377 = scalar_select %p376, %s25, 3
          %s378 = scalar_lea.vmem %s7, %s377
        $region52: #{tpu_custom_call.1} parent=27 // pred_fallthru
          _
        // Predicated region
        $region53: #{tpu_custom_call.1} parent=27 // pred_check
          %p379 = pneg %p252
        $region54: #{tpu_custom_call.1} parent=27 // pred_check_branch
          %381 = sbr.rel (%p379) target = $region56
        $region55: #{tpu_custom_call.1} parent=27 // pred_region
          %p382 = scmp.lt.s32.totalorder %s25, 3
          %s383 = scalar_select %p382, %s25, 3
          %s384 = smul.addr %s383, 4
          %s385 = scalar_lea.vmem %s8, %s384
        $region56: #{tpu_custom_call.1} parent=27 // pred_fallthru
          _
      $region28: #{tpu_custom_call.1} parent=5 // pred_fallthru
        _
      %p386 = scmp.le.s32.totalorder 1, %s17
      %p387 = scmp.lt.s32.totalorder %s17, 5
      %p388 = pnand %p386, %p387
      %p389 = pneg %p388
      // Predicated region
      $region57: #{tpu_custom_call.1} parent=5 // pred_check
        _
      $region58: #{tpu_custom_call.1} parent=5 // pred_check_branch
        %391 = sbr.rel (%p388) target = $region60
      $region59: #{tpu_custom_call.1} parent=5 // pred_region
        %s392 = ssub.s32 %s17, 1
        %p393 = scmp.lt.s32.totalorder %s26, 0
        %s394 = scalar_select %p393, %s26, 0
        %s395 = smul.addr %s394, 4
        %s396 = scalar_lea.vmem %s0, %s395
        %p397 = pneg %p55
        %p398 = pneg %p52
        %p399 = pneg %p76
        %p400 = pneg %p73
        %p401 = scmp.lt.s32.totalorder %s27, 3
        %s402 = scalar_select %p401, %s27, 3
        %s403 = smul.addr %s402, 4
        %s404 = smul.addr %s403, 4
        %s405 = scalar_lea.vmem %s2, %s404
        %p406 = pneg %p102
        %p407 = pneg %p99
        %p408 = scmp.lt.s32.totalorder %s27, 3
        %s409 = scalar_select %p408, %s27, 3
        %s410 = scalar_lea.vmem %s3, %s409
        %p411 = pneg %p128
        %p412 = pneg %p125
        %p413 = scmp.lt.s32.totalorder %s27, 3
        %s414 = scalar_select %p413, %s27, 3
        %s415 = smul.addr %s414, 4
        %s416 = smul.addr %s415, 4
        %s417 = scalar_lea.vmem %s4, %s416
        %p418 = pneg %p154
        %p419 = pneg %p151
        %p420 = scmp.lt.s32.totalorder %s27, 3
        %s421 = scalar_select %p420, %s27, 3
        %s422 = scalar_lea.vmem %s5, %s421
        %p423 = pneg %p180
        %p424 = pneg %p177
        %p425 = scmp.lt.s32.totalorder %s27, 3
        %s426 = scalar_select %p425, %s27, 3
        %s427 = smul.addr %s426, 4
        %s428 = smul.addr %s427, 4
        %s429 = scalar_lea.vmem %s6, %s428
        %p430 = pneg %p206
        %p431 = pneg %p203
        %p432 = scmp.lt.s32.totalorder %s27, 3
        %s433 = scalar_select %p432, %s27, 3
        %s434 = scalar_lea.vmem %s7, %s433
        %p435 = pneg %p232
        %p436 = pneg %p229
        %p437 = scmp.lt.s32.totalorder %s27, 3
        %s438 = scalar_select %p437, %s27, 3
        %s439 = smul.addr %s438, 4
        %s440 = scalar_lea.vmem %s8, %s439
        %p441 = pneg %p258
        %p442 = pneg %p255
        %p443 = pneg %p279
        %p444 = pneg %p276
        %p445 = pneg %p305
        %p446 = pneg %p302
        %p447 = scmp.lt.s32.totalorder %s26, 0
        %s448 = scalar_select %p447, %s26, 0
        %s449 = smul.addr %s448, 4
        %s450 = scalar_lea.vmem %s0, %s449
        %p451 = scmp.lt.s32.totalorder %s27, 3
        %s452 = scalar_select %p451, %s27, 3
        %s453 = smul.addr %s452, 4
        %s454 = smul.addr %s453, 4
        %s455 = scalar_lea.vmem %s2, %s454
        %p456 = scmp.lt.s32.totalorder %s27, 3
        %s457 = scalar_select %p456, %s27, 3
        %s458 = scalar_lea.vmem %s3, %s457
        %p459 = scmp.lt.s32.totalorder %s27, 3
        %s460 = scalar_select %p459, %s27, 3
        %s461 = smul.addr %s460, 4
        %s462 = smul.addr %s461, 4
        %s463 = scalar_lea.vmem %s4, %s462
        %p464 = scmp.lt.s32.totalorder %s27, 3
        %s465 = scalar_select %p464, %s27, 3
        %s466 = scalar_lea.vmem %s5, %s465
        %p467 = scmp.lt.s32.totalorder %s27, 3
        %s468 = scalar_select %p467, %s27, 3
        %s469 = smul.addr %s468, 4
        %s470 = smul.addr %s469, 4
        %s471 = scalar_lea.vmem %s6, %s470
        %p472 = scmp.lt.s32.totalorder %s27, 3
        %s473 = scalar_select %p472, %s27, 3
        %s474 = scalar_lea.vmem %s7, %s473
        %p475 = scmp.lt.s32.totalorder %s27, 3
        %s476 = scalar_select %p475, %s27, 3
        %s477 = smul.addr %s476, 4
        %s478 = scalar_lea.vmem %s8, %s477
        %p480 = scmp.eq.s32.totalorder %s27, 0
        // Predicated region
        $region61: #{tpu_custom_call.1} parent=59 // pred_check
          %p481 = pneg %p480
        $region62: #{tpu_custom_call.1} parent=59 // pred_check_branch
          %483 = sbr.rel (%p481) target = $region64
        $region63: #{tpu_custom_call.1} parent=59 // pred_region
          %vm484 = vcmask 261120
          %485 = vst.msk [vmem:[#allocation2] sm:$0xff] %vm484, 0.0
        $region64: #{tpu_custom_call.1} parent=59 // pred_fallthru
          _
        %v486 = vld [vmem:[%s450] sm:$0xf]
        %v487 = vld [vmem:[%s1] sm:$0xf]
        %v488 = vld [vmem:[%s455] sm:$0xf]
        %v489 = vld [vmem:[%s455 + $0x4] sm:$0xf]
        %v490 = vld [vmem:[%s455 + $0x8] sm:$0xf]
        %v491 = vld [vmem:[%s455 + $0xc] sm:$0xf]
        %v492 = vld [vmem:[%s458] sm:$0x1]
        %v494 = vlaneseq
        %v495 = vshrl.u32 %v494, 7
        %v496 = vsub.s32 0, %v495
        %v497 = vrot.slane %v492, %v496
        %v503 = vunpack.c.l.b16 %v488
        %v504 = vunpack.c.l.b16 %v489
        %v505 = vunpack.c.l.b16 %v490
        %v506 = vunpack.c.l.b16 %v491
        %v507 = vpack.c.b16 %v504, %v503
        %v508 = vpack.c.b16 %v506, %v505
        %vm511 = vcmask 261120
        %v513 = vsel %vm511, %v486, 0
        %515 = vmatprep.subr.bf16.mxu0 0
        %516 = vmatpush1.bf16.msra.mxu0 %v507
        %517 = vmatprep.subr.bf16.mxu0 0
        %518 = vmatpush1.bf16.msra.mxu0 %v508
        %519 = vmatprep.subr.bf16.mxu0 0
        %520 = vmatpush1.bf16.msra.mxu0 0
        %521 = vmatprep.subr.bf16.mxu0 0
        %522 = vmatpush1.bf16.msra.mxu0 0
        %523 = vmatprep.subr.bf16.mxu0 0
        %524 = vmatpush1.bf16.msra.mxu0 0
        %525 = vmatprep.subr.bf16.mxu0 0
        %526 = vmatpush1.bf16.msra.mxu0 0
        %527 = vmatprep.subr.bf16.mxu0 0
        %528 = vmatpush1.bf16.msra.mxu0 0
        %529 = vmatprep.subr.bf16.mxu0 0
        %530 = vmatpush1.bf16.msra.mxu0 0
        %531 = vmatprep.subr.bf16.mxu0 0
        %532 = vmatpush1.bf16.msra.mxu0 0
        %533 = vmatprep.subr.bf16.mxu0 0
        %534 = vmatpush1.bf16.msra.mxu0 0
        %535 = vmatprep.subr.bf16.mxu0 0
        %536 = vmatpush1.bf16.msra.mxu0 0
        %537 = vmatprep.subr.bf16.mxu0 0
        %538 = vmatpush1.bf16.msra.mxu0 0
        %539 = vmatprep.subr.bf16.mxu0 0
        %540 = vmatpush1.bf16.msra.mxu0 0
        %541 = vmatprep.subr.bf16.mxu0 0
        %542 = vmatpush1.bf16.msra.mxu0 0
        %543 = vmatprep.subr.bf16.mxu0 0
        %544 = vmatpush1.bf16.msra.mxu0 0
        %545 = vmatprep.subr.bf16.mxu0 0
        %546 = vmatpush1.bf16.msra.mxu0 0
        %547 = vmatprep.mubr.bf16.mxu0 0
        %548 = vmatmul.mubr.bf16.gmra.mrb[0].mxu0 %v513
        %v549 = vpop.f32.mrb[0].mxu0
        %v550 = vadd.f32 %v497, %v549
        %v551 = vpop.f32.mrb[0].mxu0
        %v552 = vpop.f32.mrb[0].mxu0
        %v553 = vpop.f32.mrb[0].mxu0
        %554 = vdwg.mxu0
        %v555 = vld [vmem:[%s463] sm:$0xf]
        %v556 = vld [vmem:[%s463 + $0x4] sm:$0xf]
        %v557 = vld [vmem:[%s463 + $0x8] sm:$0xf]
        %v558 = vld [vmem:[%s463 + $0xc] sm:$0xf]
        %v559 = vld [vmem:[%s466] sm:$0x1]
        %v561 = vlaneseq
        %v562 = vshrl.u32 %v561, 7
        %v563 = vsub.s32 0, %v562
        %v564 = vrot.slane %v559, %v563
        %v570 = vunpack.c.l.b16 %v555
        %v571 = vunpack.c.l.b16 %v556
        %v572 = vunpack.c.l.b16 %v557
        %v573 = vunpack.c.l.b16 %v558
        %v574 = vpack.c.b16 %v571, %v570
        %v575 = vpack.c.b16 %v573, %v572
        %v579 = vsel %vm511, %v487, 0
        %581 = vmatprep.subr.bf16.mxu0 0
        %582 = vmatpush1.bf16.msra.mxu0 %v574
        %583 = vmatprep.subr.bf16.mxu0 0
        %584 = vmatpush1.bf16.msra.mxu0 %v575
        %585 = vmatprep.subr.bf16.mxu0 0
        %586 = vmatpush1.bf16.msra.mxu0 0
        %587 = vmatprep.subr.bf16.mxu0 0
        %588 = vmatpush1.bf16.msra.mxu0 0
        %589 = vmatprep.subr.bf16.mxu0 0
        %590 = vmatpush1.bf16.msra.mxu0 0
        %591 = vmatprep.subr.bf16.mxu0 0
        %592 = vmatpush1.bf16.msra.mxu0 0
        %593 = vmatprep.subr.bf16.mxu0 0
        %594 = vmatpush1.bf16.msra.mxu0 0
        %595 = vmatprep.subr.bf16.mxu0 0
        %596 = vmatpush1.bf16.msra.mxu0 0
        %597 = vmatprep.subr.bf16.mxu0 0
        %598 = vmatpush1.bf16.msra.mxu0 0
        %599 = vmatprep.subr.bf16.mxu0 0
        %600 = vmatpush1.bf16.msra.mxu0 0
        %601 = vmatprep.subr.bf16.mxu0 0
        %602 = vmatpush1.bf16.msra.mxu0 0
        %603 = vmatprep.subr.bf16.mxu0 0
        %604 = vmatpush1.bf16.msra.mxu0 0
        %605 = vmatprep.subr.bf16.mxu0 0
        %606 = vmatpush1.bf16.msra.mxu0 0
        %607 = vmatprep.subr.bf16.mxu0 0
        %608 = vmatpush1.bf16.msra.mxu0 0
        %609 = vmatprep.subr.bf16.mxu0 0
        %610 = vmatpush1.bf16.msra.mxu0 0
        %611 = vmatprep.subr.bf16.mxu0 0
        %612 = vmatpush1.bf16.msra.mxu0 0
        %613 = vmatprep.mubr.bf16.mxu0 0
        %614 = vmatmul.mubr.bf16.gmra.mrb[0].mxu0 %v579
        %v615 = vpop.f32.mrb[0].mxu0
        %v616 = vadd.f32 %v564, %v615
        %v617 = vpop.f32.mrb[0].mxu0
        %v618 = vpop.f32.mrb[0].mxu0
        %v619 = vpop.f32.mrb[0].mxu0
        %620 = vdwg.mxu0
        %v621 = vld [vmem:[%s471] sm:$0xf]
        %v622 = vld [vmem:[%s471 + $0x4] sm:$0xf]
        %v623 = vld [vmem:[%s471 + $0x8] sm:$0xf]
        %v624 = vld [vmem:[%s471 + $0xc] sm:$0xf]
        %v625 = vld [vmem:[%s474] sm:$0x1]
        %v627 = vlaneseq
        %v628 = vshrl.u32 %v627, 7
        %v629 = vsub.s32 0, %v628
        %v630 = vrot.slane %v625, %v629
        %v636 = vunpack.c.l.b16 %v621
        %v637 = vunpack.c.l.b16 %v622
        %v638 = vunpack.c.l.b16 %v623
        %v639 = vunpack.c.l.b16 %v624
        %v640 = vpack.c.b16 %v637, %v636
        %v641 = vpack.c.b16 %v639, %v638
        %644 = vmatprep.subr.bf16.mxu0 0
        %645 = vmatpush1.bf16.msra.mxu0 %v640
        %646 = vmatprep.subr.bf16.mxu0 0
        %647 = vmatpush1.bf16.msra.mxu0 %v641
        %648 = vmatprep.subr.bf16.mxu0 0
        %649 = vmatpush1.bf16.msra.mxu0 0
        %650 = vmatprep.subr.bf16.mxu0 0
        %651 = vmatpush1.bf16.msra.mxu0 0
        %652 = vmatprep.subr.bf16.mxu0 0
        %653 = vmatpush1.bf16.msra.mxu0 0
        %654 = vmatprep.subr.bf16.mxu0 0
        %655 = vmatpush1.bf16.msra.mxu0 0
        %656 = vmatprep.subr.bf16.mxu0 0
        %657 = vmatpush1.bf16.msra.mxu0 0
        %658 = vmatprep.subr.bf16.mxu0 0
        %659 = vmatpush1.bf16.msra.mxu0 0
        %660 = vmatprep.subr.bf16.mxu0 0
        %661 = vmatpush1.bf16.msra.mxu0 0
        %662 = vmatprep.subr.bf16.mxu0 0
        %663 = vmatpush1.bf16.msra.mxu0 0
        %664 = vmatprep.subr.bf16.mxu0 0
        %665 = vmatpush1.bf16.msra.mxu0 0
        %666 = vmatprep.subr.bf16.mxu0 0
        %667 = vmatpush1.bf16.msra.mxu0 0
        %668 = vmatprep.subr.bf16.mxu0 0
        %669 = vmatpush1.bf16.msra.mxu0 0
        %670 = vmatprep.subr.bf16.mxu0 0
        %671 = vmatpush1.bf16.msra.mxu0 0
        %672 = vmatprep.subr.bf16.mxu0 0
        %673 = vmatpush1.bf16.msra.mxu0 0
        %674 = vmatprep.subr.bf16.mxu0 0
        %675 = vmatpush1.bf16.msra.mxu0 0
        %676 = vmatprep.mubr.bf16.mxu0 0
        %677 = vmatmul.mubr.bf16.gmra.mrb[0].mxu0 %v579
        %v678 = vpop.f32.mrb[0].mxu0
        %v679 = vadd.f32 %v630, %v678
        %v680 = vpop.f32.mrb[0].mxu0
        %v681 = vpop.f32.mrb[0].mxu0
        %v682 = vpop.f32.mrb[0].mxu0
        %683 = vdwg.mxu0
        %v684 = vmul.f32 %v550, 0.35355338
        %v685 = vpack.c.bf16 %v684, %v684
        %v686 = vpack.c.bf16 %v616, %v616
        %v687 = vpack.c.bf16 %v679, %v679
        %vm688 = vcmask 64512
        %v690 = vsel %vm688, %v685, 0
        %v693 = vsel %vm688, %v686, 0
        %695 = vmatprep.subr.bf16.mxu0 0
        %696 = vmatpush1.bf16.xpose.msra.mxu0 %v693
        %697 = vmatprep.subr.bf16.mxu0 0
        %698 = vmatpush1.bf16.xpose.msra.mxu0 0
        %699 = vmatprep.subr.bf16.mxu0 0
        %700 = vmatpush1.bf16.xpose.msra.mxu0 0
        %701 = vmatprep.subr.bf16.mxu0 0
        %702 = vmatpush1.bf16.xpose.msra.mxu0 0
        %703 = vmatprep.subr.bf16.mxu0 0
        %704 = vmatpush1.bf16.xpose.msra.mxu0 0
        %705 = vmatprep.subr.bf16.mxu0 0
        %706 = vmatpush1.bf16.xpose.msra.mxu0 0
        %707 = vmatprep.subr.bf16.mxu0 0
        %708 = vmatpush1.bf16.xpose.msra.mxu0 0
        %709 = vmatprep.subr.bf16.mxu0 0
        %710 = vmatpush1.bf16.xpose.msra.mxu0 0
        %711 = vmatprep.subr.bf16.mxu0 0
        %712 = vmatpush1.bf16.xpose.msra.mxu0 0
        %713 = vmatprep.subr.bf16.mxu0 0
        %714 = vmatpush1.bf16.xpose.msra.mxu0 0
        %715 = vmatprep.subr.bf16.mxu0 0
        %716 = vmatpush1.bf16.xpose.msra.mxu0 0
        %717 = vmatprep.subr.bf16.mxu0 0
        %718 = vmatpush1.bf16.xpose.msra.mxu0 0
        %719 = vmatprep.subr.bf16.mxu0 0
        %720 = vmatpush1.bf16.xpose.msra.mxu0 0
        %721 = vmatprep.subr.bf16.mxu0 0
        %722 = vmatpush1.bf16.xpose.msra.mxu0 0
        %723 = vmatprep.subr.bf16.mxu0 0
        %724 = vmatpush1.bf16.xpose.msra.mxu0 0
        %725 = vmatprep.subr.bf16.mxu0 0
        %726 = vmatpush1.bf16.xpose.msra.mxu0 0
        %727 = vmatprep.mubr.bf16.mxu0 0
        %728 = vmatmul.mubr.bf16.gmra.mrb[0].mxu0 %v690
        %v729 = vpop.f32.mrb[0].mxu0
        %v730 = vadd.f32 0.0, %v729
        %v731 = vpop.f32.mrb[0].mxu0
        %v732 = vpop.f32.mrb[0].mxu0
        %v733 = vpop.f32.mrb[0].mxu0
        %734 = vdwg.mxu0
        %v735 = vsel %vm688, %v730, -inf
        %736 = vmax.xlane.f32.xlu0 %v735
        %v737 = vpop.xlane.xlu0 %736
        %v738 = vsub.f32 %v730, %v737
        %v739 = vmul.f32 %v738, 1.442695
        %v740 = vpow.pop %v739
        %v741 = vsel %vm688, %v740, 0.0
        %742 = vadd.xlane.f32.xlu0 %v741
        %v743 = vpop.xlane.xlu0 %742
        %v744 = vrcp.pop %v743
        %v745 = vmul.f32 %v740, %v744
        %v746 = vpack.c.bf16 %v745, %v745
        %v748 = vsel %vm688, %v746, 0
        %vm750 = vcmask 1043456
        %v752 = vsel %vm750, %v687, 0
        %754 = vmatprep.subr.bf16.mxu0 0
        %755 = vmatpush1.bf16.msra.mxu0 %v752
        %756 = vmatprep.subr.bf16.mxu0 0
        %757 = vmatpush1.bf16.msra.mxu0 0
        %758 = vmatprep.subr.bf16.mxu0 0
        %759 = vmatpush1.bf16.msra.mxu0 0
        %760 = vmatprep.subr.bf16.mxu0 0
        %761 = vmatpush1.bf16.msra.mxu0 0
        %762 = vmatprep.subr.bf16.mxu0 0
        %763 = vmatpush1.bf16.msra.mxu0 0
        %764 = vmatprep.subr.bf16.mxu0 0
        %765 = vmatpush1.bf16.msra.mxu0 0
        %766 = vmatprep.subr.bf16.mxu0 0
        %767 = vmatpush1.bf16.msra.mxu0 0
        %768 = vmatprep.subr.bf16.mxu0 0
        %769 = vmatpush1.bf16.msra.mxu0 0
        %770 = vmatprep.subr.bf16.mxu0 0
        %771 = vmatpush1.bf16.msra.mxu0 0
        %772 = vmatprep.subr.bf16.mxu0 0
        %773 = vmatpush1.bf16.msra.mxu0 0
        %774 = vmatprep.subr.bf16.mxu0 0
        %775 = vmatpush1.bf16.msra.mxu0 0
        %776 = vmatprep.subr.bf16.mxu0 0
        %777 = vmatpush1.bf16.msra.mxu0 0
        %778 = vmatprep.subr.bf16.mxu0 0
        %779 = vmatpush1.bf16.msra.mxu0 0
        %780 = vmatprep.subr.bf16.mxu0 0
        %781 = vmatpush1.bf16.msra.mxu0 0
        %782 = vmatprep.subr.bf16.mxu0 0
        %783 = vmatpush1.bf16.msra.mxu0 0
        %784 = vmatprep.subr.bf16.mxu0 0
        %785 = vmatpush1.bf16.msra.mxu0 0
        %786 = vmatprep.mubr.bf16.mxu0 0
        %787 = vmatmul.mubr.bf16.gmra.mrb[0].mxu0 %v748
        %v788 = vpop.f32.mrb[0].mxu0
        %v789 = vadd.f32 0.0, %v788
        %v790 = vpop.f32.mrb[0].mxu0
        %v791 = vpop.f32.mrb[0].mxu0
        %v792 = vpop.f32.mrb[0].mxu0
        %793 = vdwg.mxu0
        %v794 = vld [vmem:[#allocation2] sm:$0xff]
        %v795 = vpack.c.bf16 %v789, %v789
        %v796 = vld [vmem:[%s478] sm:$0xf]
        %v798 = vsel %vm688, %v795, 0
        %v801 = vsel %vm750, %v796, 0
        %803 = vmatprep.subr.bf16.mxu0 0
        %804 = vmatpush1.bf16.msra.mxu0 %v801
        %805 = vmatprep.subr.bf16.mxu0 0
        %806 = vmatpush1.bf16.msra.mxu0 0
        %807 = vmatprep.subr.bf16.mxu0 0
        %808 = vmatpush1.bf16.msra.mxu0 0
        %809 = vmatprep.subr.bf16.mxu0 0
        %810 = vmatpush1.bf16.msra.mxu0 0
        %811 = vmatprep.subr.bf16.mxu0 0
        %812 = vmatpush1.bf16.msra.mxu0 0
        %813 = vmatprep.subr.bf16.mxu0 0
        %814 = vmatpush1.bf16.msra.mxu0 0
        %815 = vmatprep.subr.bf16.mxu0 0
        %816 = vmatpush1.bf16.msra.mxu0 0
        %817 = vmatprep.subr.bf16.mxu0 0
        %818 = vmatpush1.bf16.msra.mxu0 0
        %819 = vmatprep.subr.bf16.mxu0 0
        %820 = vmatpush1.bf16.msra.mxu0 0
        %821 = vmatprep.subr.bf16.mxu0 0
        %822 = vmatpush1.bf16.msra.mxu0 0
        %823 = vmatprep.subr.bf16.mxu0 0
        %824 = vmatpush1.bf16.msra.mxu0 0
        %825 = vmatprep.subr.bf16.mxu0 0
        %826 = vmatpush1.bf16.msra.mxu0 0
        %827 = vmatprep.subr.bf16.mxu0 0
        %828 = vmatpush1.bf16.msra.mxu0 0
        %829 = vmatprep.subr.bf16.mxu0 0
        %830 = vmatpush1.bf16.msra.mxu0 0
        %831 = vmatprep.subr.bf16.mxu0 0
        %832 = vmatpush1.bf16.msra.mxu0 0
        %833 = vmatprep.subr.bf16.mxu0 0
        %834 = vmatpush1.bf16.msra.mxu0 0
        %835 = vmatprep.mubr.bf16.mxu0 0
        %836 = vmatmul.mubr.bf16.gmra.mrb[0].mxu0 %v798
        %v837 = vpop.f32.mrb[0].mxu0
        %v838 = vadd.f32 0.0, %v837
        %v839 = vpop.f32.mrb[0].mxu0
        %v840 = vpop.f32.mrb[0].mxu0
        %v841 = vpop.f32.mrb[0].mxu0
        %842 = vdwg.mxu0
        %v843 = vadd.f32 %v794, %v838
        %844 = vst.msk [vmem:[#allocation2] sm:$0xff] %vm511, %v843
        %p845 = scmp.eq.s32.totalorder %s27, 3
        // Predicated region
        $region65: #{tpu_custom_call.1} parent=59 // pred_check
          %p846 = pneg %p845
        $region66: #{tpu_custom_call.1} parent=59 // pred_check_branch
          %848 = sbr.rel (%p846) target = $region68
        $region67: #{tpu_custom_call.1} parent=59 // pred_region
          %v849 = vld [vmem:[#allocation2] sm:$0xff]
          %v850 = vld [vmem:[%s9] sm:$0x1]
          %v852 = vlaneseq
          %v853 = vshrl.u32 %v852, 7
          %v854 = vsub.s32 0, %v853
          %v855 = vrot.slane %v850, %v854
          %v857 = vadd.f32 %v849, %v855
          %858 = vst.msk [vmem:[#allocation3] sm:$0xff] %vm511, %v857
        $region68: #{tpu_custom_call.1} parent=59 // pred_fallthru
          _
        // Predicated region
        $region69: #{tpu_custom_call.1} parent=59 // pred_check
          %p859 = pneg %p302
        $region70: #{tpu_custom_call.1} parent=59 // pred_check_branch
          %861 = sbr.rel (%p859) target = $region72
        $region71: #{tpu_custom_call.1} parent=59 // pred_region
          %s863 = ssub.s32 128, 128
          %864 = vsyncadd [#allocation4], %s863
          %s865 = smul.addr %s26, 128
          %s866 = scalar_lea.hbm %s10, %s865
          %s868 = sshll.u32 [#allocation3], 4
          %s869 = int_to_ptr.vmem [resolvable:$true] %s868
          %871 = dma.vmem_to_hbm [thread:$0]  %s869, 128, %s866, [#allocation4]
        $region72: #{tpu_custom_call.1} parent=59 // pred_fallthru
          _
        // Predicated region
        $region73: #{tpu_custom_call.1} parent=59 // pred_check
          %p872 = pneg %p302
        $region74: #{tpu_custom_call.1} parent=59 // pred_check_branch
          %874 = sbr.rel (%p872) target = $region76
        $region75: #{tpu_custom_call.1} parent=59 // pred_region
          %875 = dma.done [#allocation4], 128
        $region76: #{tpu_custom_call.1} parent=59 // pred_fallthru
          _
      $region60: #{tpu_custom_call.1} parent=5 // pred_fallthru
        _
      %p876 = scmp.le.s32.totalorder 2, %s17
      // Predicated region
      $region77: #{tpu_custom_call.1} parent=5 // pred_check
        %p877 = pneg %p876
      $region78: #{tpu_custom_call.1} parent=5 // pred_check_branch
        %879 = sbr.rel (%p877) target = $region80
      $region79: #{tpu_custom_call.1} parent=5 // pred_region
        %s880 = ssub.s32 %s17, 2
      $region80: #{tpu_custom_call.1} parent=5 // pred_fallthru
        _
    $region6: #{tpu_custom_call.1} parent=1 // loop_footer
      %s21 = sadd.s32 1, %s17
    $region7: #{tpu_custom_call.1} parent=1 // loop_footer_branch
      %16 = sbr.rel target = $region3
    $region8: #{tpu_custom_call.1} parent=1 // loop_exit
      _
    %881 = vsyncpa [#allocation4], 1
    %s882 = scalar_lea.sflag [#allocation4], 1
    %883 = vsyncpa %s882, 1

</llo_original>
